<compile_context>
chip_gen: v7x
topology: tpu7x:2x2x1
jax: 0.10.0
libtpu: 0.0.40
codegen_flags: <defaults>
</compile_context>

<pallas_src>
import functools

import jax
import jax.numpy as jnp
from jax import lax
from jax.experimental import pallas as pl
from jax.experimental.pallas import tpu as pltpu


def _shift_time(x, s):
    """out[:, t] = x[:, t + s], zero-filled outside [0, T). `s` is a static int."""
    if s == 0:
        return x
    C, T = x.shape
    zeros = jnp.zeros((C, abs(s)), x.dtype)
    if s > 0:
        return jnp.concatenate([x[:, s:], zeros], axis=1)
    return jnp.concatenate([zeros, x[:, : T + s]], axis=1)


def _fused_block_kernel(x_ref, m_ref, w_ref, b_ref, g_ref, be_ref, o_ref, *, ksize, eps):
    """One DurationPredictorNS2 block for one batch row.

    x_ref: (C_in, T)   m_ref: (1, T)   w_ref: (K, C_out, C_in)
    b_ref/g_ref/be_ref: (C_out, 1)     o_ref: (C_out, T)
    """
    x = x_ref[...].astype(jnp.float32)
    m = m_ref[...].astype(jnp.float32)
    xm = x * m                                              # conv input: x * mask

    pad = ksize // 2
    C_out, T = o_ref.shape
    acc = jnp.zeros((C_out, T), jnp.float32)
    # Conv1d as K per-tap (C_out, C_in) @ (C_in, T) MXU matmuls on lane-shifted slabs.
    for k in range(ksize):                                  # static unroll (K small, e.g. 3)
        wk = w_ref[k].astype(jnp.float32)                   # (C_out, C_in)
        acc = acc + jnp.dot(wk, _shift_time(xm, k - pad),
                            preferred_element_type=jnp.float32)
    y = acc + b_ref[...].astype(jnp.float32)                # conv output (C_out, T)

    y = jnp.maximum(y * m, 0.0)                             # ReLU(conv * mask)

    ym = y * m                                              # LayerNorm input (relu * mask)
    # Channel-wise LayerNorm (PyTorch `LayerNorm` in the module): stats over axis 0.
    # Two-pass variance (matches torch.mean((x-mean)**2)); no cancellation issues.
    mean = jnp.mean(ym, axis=0, keepdims=True)              # (1, T)
    var = jnp.mean((ym - mean) ** 2, axis=0, keepdims=True) # (1, T)
    yn = (ym - mean) * lax.rsqrt(var + eps)
    yn = yn * g_ref[...].astype(jnp.float32) + be_ref[...].astype(jnp.float32)

    # Dropout (eval) == identity applied to (LN out * mask).
    o_ref[...] = (yn * m).astype(o_ref.dtype)


def fused_conv_relu_ln_block(x, mask, w, b, gamma, beta, *, eps=1e-4):
    """mask->Conv1d->mask->ReLU->mask->LayerNorm->mask, fused.

    x: (B, C_in, T); mask: (B, 1, T); w: (C_out, C_in, K) PyTorch layout;
    b/gamma/beta: (C_out,). Returns (B, C_out, T) in x.dtype.
    """
    B, C_in, T = x.shape
    C_out, C_in_w, K = w.shape
    assert C_in_w == C_in and K % 2 == 1

    w_t = jnp.transpose(w, (2, 0, 1))        # (K, C_out, C_in): static per-tap slabs
    b2 = b.reshape(C_out, 1)
    g2 = gamma.reshape(C_out, 1)
    be2 = beta.reshape(C_out, 1)

    kernel = functools.partial(_fused_block_kernel, ksize=K, eps=eps)

    # VMEM budget (f32): double-buffered in/out blocks + weights + in-kernel temps
    # (xm, shifted tap, acc, LN temps ~ 6 row-slabs). Clamp to v7x's 64 MiB physical.
    est = 4 * (2 * (C_in * T + C_out * T) + K * C_out * C_in
               + 6 * max(C_in, C_out) * T + 4 * C_out)
    vmem_limit = int(min(64 * 1024 * 1024, max(32 * 1024 * 1024, est)))

    return pl.pallas_call(
        kernel,
        out_shape=jax.ShapeDtypeStruct((B, C_out, T), x.dtype),
        grid_spec=pltpu.PrefetchScalarGridSpec(
            num_scalar_prefetch=0,
            grid=(B,),          # one whole (C, T) row per step; >=2 steps feeds v7x's 2 TCs
            in_specs=[
                pl.BlockSpec((pl.Squeezed(), C_in, T), lambda bi: (bi, 0, 0)),
                pl.BlockSpec((pl.Squeezed(), 1, T), lambda bi: (bi, 0, 0)),
                pl.BlockSpec((K, C_out, C_in), lambda bi: (0, 0, 0)),   # resident
                pl.BlockSpec((C_out, 1), lambda bi: (0, 0)),
                pl.BlockSpec((C_out, 1), lambda bi: (0, 0)),
                pl.BlockSpec((C_out, 1), lambda bi: (0, 0)),
            ],
            out_specs=pl.BlockSpec((pl.Squeezed(), C_out, T), lambda bi: (bi, 0, 0)),
        ),
        compiler_params=pltpu.CompilerParams(
            dimension_semantics=("parallel",),
            vmem_limit_bytes=vmem_limit,
        ),
    )(x, mask, w_t, b2, g2, be2)


def _proj_kernel(x_ref, m_ref, w_ref, b_ref, o_ref):
    # Final 1x1 Conv1d (C -> 1) + mask: proj(x*mask)*mask. Channel reduction on the VPU.
    x = x_ref[...].astype(jnp.float32)          # (C, T)
    m = m_ref[...].astype(jnp.float32)          # (1, T)
    w = w_ref[...].astype(jnp.float32)          # (C, 1)
    y = jnp.sum((x * m) * w, axis=0, keepdims=True) + b_ref[...].astype(jnp.float32)
    o_ref[...] = (y * m).astype(o_ref.dtype)


def proj_mask(x, mask, w_proj, b_proj):
    """w_proj: (1, C, 1) PyTorch 1x1-conv layout; b_proj: (1,). Returns (B, 1, T)."""
    B, C, T = x.shape
    w2 = w_proj.reshape(C, 1)
    b2 = b_proj.reshape(1, 1)
    return pl.pallas_call(
        _proj_kernel,
        out_shape=jax.ShapeDtypeStruct((B, 1, T), x.dtype),
        grid_spec=pltpu.PrefetchScalarGridSpec(
            num_scalar_prefetch=0,
            grid=(B,),
            in_specs=[
                pl.BlockSpec((pl.Squeezed(), C, T), lambda bi: (bi, 0, 0)),
                pl.BlockSpec((pl.Squeezed(), 1, T), lambda bi: (bi, 0, 0)),
                pl.BlockSpec((C, 1), lambda bi: (0, 0)),
                pl.BlockSpec((1, 1), lambda bi: (0, 0)),
            ],
            out_specs=pl.BlockSpec((pl.Squeezed(), 1, T), lambda bi: (bi, 0, 0)),
        ),
        compiler_params=pltpu.CompilerParams(dimension_semantics=("parallel",)),
    )(x, mask, w2, b2)


def duration_predictor_forward(x, x_mask, params, *, eps=1e-4):
    """Full DurationPredictorNS2.forward (inference). x: (B, C_in, T); x_mask: (B, 1, T)."""
    h = x
    for (w, b, g, be) in params["blocks"]:
        h = fused_conv_relu_ln_block(h, x_mask, w, b, g, be, eps=eps)
    return proj_mask(h, x_mask, params["proj_w"], params["proj_b"])


# ----------------------------- pure-JAX reference ------------------------------------
def duration_predictor_forward_ref(x, x_mask, params, *, eps=1e-4):
    h = x.astype(jnp.float32)
    m = x_mask.astype(jnp.float32)
    for (w, b, g, be) in params["blocks"]:
        pad = w.shape[-1] // 2
        y = lax.conv_general_dilated(
            h * m, w.astype(jnp.float32), window_strides=(1,), padding=[(pad, pad)],
            dimension_numbers=("NCH", "OIH", "NCH"),
            precision=lax.Precision.HIGHEST) + b.reshape(1, -1, 1)
        y = jnp.maximum(y * m, 0.0)
        ym = y * m
        mean = jnp.mean(ym, axis=1, keepdims=True)
        var = jnp.mean((ym - mean) ** 2, axis=1, keepdims=True)
        y = (ym - mean) * lax.rsqrt(var + eps) * g.reshape(1, -1, 1) + be.reshape(1, -1, 1)
        h = y * m                                    # dropout == identity in eval
    o = jnp.einsum("oc,bct->bot", params["proj_w"].reshape(1, -1), h * m,
                   precision=lax.Precision.HIGHEST) + params["proj_b"].reshape(1, 1, 1)
    return (o * m).astype(x.dtype)


if __name__ == "__main__":
    key = jax.random.PRNGKey(0)
    # Small shapes consistent with the module: (B, in_channels, T), filter_channels, K.
    B, C_in, C_f, K, T = 2, 8, 32, 3, 24
    n_blocks = 13          # conv_1 block + 12 repeated (Conv1d, ReLU, LayerNorm, Dropout)

    keys = jax.random.split(key, 4 * n_blocks + 3)
    blocks = []
    ci, ki = C_in, 0
    for _ in range(n_blocks):
        w = 0.3 * jax.random.normal(keys[ki], (C_f, ci, K), jnp.float32); ki += 1
        b = 0.1 * jax.random.normal(keys[ki], (C_f,), jnp.float32); ki += 1
        g = 1.0 + 0.1 * jax.random.normal(keys[ki], (C_f,), jnp.float32); ki += 1
        be = 0.1 * jax.random.normal(keys[ki], (C_f,), jnp.float32); ki += 1
        blocks.append((w, b, g, be))
        ci = C_f
    proj_w = 0.3 * jax.random.normal(keys[ki], (1, C_f, 1), jnp.float32); ki += 1
    proj_b = 0.1 * jax.random.normal(keys[ki], (1,), jnp.float32); ki += 1
    x = jax.random.normal(keys[ki], (B, C_in, T), jnp.float32)

    # Ragged-length mask (second utterance shorter) — exercises the masked columns.
    lengths = jnp.array([T, 17], jnp.int32)
    x_mask = (jnp.arange(T)[None, None, :] < lengths[:, None, None]).astype(jnp.float32)

    params = {"blocks": blocks, "proj_w": proj_w, "proj_b": proj_b}

    out = jax.block_until_ready(duration_predictor_forward(x, x_mask, params, eps=1e-4))
    ref = duration_predictor_forward_ref(x, x_mask, params, eps=1e-4)

    assert out.shape == (B, 1, T)
    max_err = float(jnp.max(jnp.abs(out - ref)))
    assert jnp.allclose(out, ref, atol=2e-3, rtol=2e-3), f"max abs err {max_err}"
    print("KERNEL_OK")
</pallas_src>

<mosaic_0001>
module attributes {stable_mosaic.version = 11 : i64} {
  func.func @_fused_block_kernel(%arg0: i32, %arg1: memref<1x8x24xf32, #tpu.memory_space<vmem>>, %arg2: memref<1x1x24xf32, #tpu.memory_space<vmem>>, %arg3: memref<3x32x8xf32, #tpu.memory_space<vmem>>, %arg4: memref<32x1xf32, #tpu.memory_space<vmem>>, %arg5: memref<32x1xf32, #tpu.memory_space<vmem>>, %arg6: memref<32x1xf32, #tpu.memory_space<vmem>>, %arg7: memref<1x32x24xf32, #tpu.memory_space<vmem>>) attributes {dimension_semantics = [#tpu.dimension_semantics<parallel>], iteration_bounds = array<i64: 2>, scalar_prefetch = 0 : i64, scratch_operands = 0 : i64, tpu.core_type = #tpu.core_type<tc>, window_params = [{transform_indices = @transform_0, window_bounds = array<i64: 1, 8, 24>}, {transform_indices = @transform_1, window_bounds = array<i64: 1, 1, 24>}, {pipeline_mode = #tpu.pipeline_mode<synchronous>, transform_indices = @transform_2, window_bounds = array<i64: 3, 32, 8>}, {pipeline_mode = #tpu.pipeline_mode<synchronous>, transform_indices = @transform_3, window_bounds = array<i64: 32, 1>}, {pipeline_mode = #tpu.pipeline_mode<synchronous>, transform_indices = @transform_4, window_bounds = array<i64: 32, 1>}, {pipeline_mode = #tpu.pipeline_mode<synchronous>, transform_indices = @transform_5, window_bounds = array<i64: 32, 1>}, {transform_indices = @transform_6, window_bounds = array<i64: 1, 32, 24>}]} {
    %c0 = arith.constant 0 : index
    %c0_0 = arith.constant 0 : index
    %c0_1 = arith.constant 0 : index
    %0 = vector.load %arg1[%c0, %c0_0, %c0_1] : memref<1x8x24xf32, #tpu.memory_space<vmem>>, vector<1x8x24xf32>
    %1 = vector.shape_cast %0 : vector<1x8x24xf32> to vector<8x24xf32>
    %c0_2 = arith.constant 0 : index
    %c0_3 = arith.constant 0 : index
    %c0_4 = arith.constant 0 : index
    %2 = vector.load %arg2[%c0_2, %c0_3, %c0_4] : memref<1x1x24xf32, #tpu.memory_space<vmem>>, vector<1x1x24xf32>
    %3 = vector.shape_cast %2 : vector<1x1x24xf32> to vector<1x24xf32>
    %4 = vector.broadcast %3 : vector<1x24xf32> to vector<8x24xf32>
    %5 = arith.mulf %1, %4 : vector<8x24xf32>
    %cst = arith.constant 0.000000e+00 : f32
    %6 = vector.broadcast %cst : f32 to vector<32x24xf32>
    %c0_5 = arith.constant 0 : index
    %c0_6 = arith.constant 0 : index
    %c0_7 = arith.constant 0 : index
    %7 = vector.load %arg3[%c0_5, %c0_6, %c0_7] : memref<3x32x8xf32, #tpu.memory_space<vmem>>, vector<1x32x8xf32>
    %8 = vector.shape_cast %7 : vector<1x32x8xf32> to vector<32x8xf32>
    %cst_8 = arith.constant 0.000000e+00 : f32
    %9 = vector.broadcast %cst_8 : f32 to vector<8x1xf32>
    %10 = vector.extract_strided_slice %5 {offsets = [0, 0], sizes = [8, 23], strides = [1, 1]} : vector<8x24xf32> to vector<8x23xf32>
    %11 = tpu.concatenate %9, %10 in 1 : vector<8x1xf32>, vector<8x23xf32> -> vector<8x24xf32>
    %cst_9 = arith.constant dense<0.000000e+00> : vector<32x24xf32>
    %12 = tpu.matmul %8, %11, %cst_9 {dimension_numbers = #tpu.dot_dimension_numbers<[1], [0], [0], [1], [0, 0, 1, 1], [], []>} : vector<32x8xf32>, vector<8x24xf32>, vector<32x24xf32> -> vector<32x24xf32>
    %13 = arith.addf %6, %12 : vector<32x24xf32>
    %c1 = arith.constant 1 : index
    %c0_10 = arith.constant 0 : index
    %c0_11 = arith.constant 0 : index
    %14 = vector.load %arg3[%c1, %c0_10, %c0_11] : memref<3x32x8xf32, #tpu.memory_space<vmem>>, vector<1x32x8xf32>
    %15 = vector.shape_cast %14 : vector<1x32x8xf32> to vector<32x8xf32>
    %cst_12 = arith.constant dense<0.000000e+00> : vector<32x24xf32>
    %16 = tpu.matmul %15, %5, %cst_12 {dimension_numbers = #tpu.dot_dimension_numbers<[1], [0], [0], [1], [0, 0, 1, 1], [], []>} : vector<32x8xf32>, vector<8x24xf32>, vector<32x24xf32> -> vector<32x24xf32>
    %17 = arith.addf %13, %16 : vector<32x24xf32>
    %c2 = arith.constant 2 : index
    %c0_13 = arith.constant 0 : index
    %c0_14 = arith.constant 0 : index
    %18 = vector.load %arg3[%c2, %c0_13, %c0_14] : memref<3x32x8xf32, #tpu.memory_space<vmem>>, vector<1x32x8xf32>
    %19 = vector.shape_cast %18 : vector<1x32x8xf32> to vector<32x8xf32>
    %cst_15 = arith.constant 0.000000e+00 : f32
    %20 = vector.broadcast %cst_15 : f32 to vector<8x1xf32>
    %21 = vector.extract_strided_slice %5 {offsets = [0, 1], sizes = [8, 23], strides = [1, 1]} : vector<8x24xf32> to vector<8x23xf32>
    %22 = tpu.concatenate %21, %20 in 1 : vector<8x23xf32>, vector<8x1xf32> -> vector<8x24xf32>
    %cst_16 = arith.constant dense<0.000000e+00> : vector<32x24xf32>
    %23 = tpu.matmul %19, %22, %cst_16 {dimension_numbers = #tpu.dot_dimension_numbers<[1], [0], [0], [1], [0, 0, 1, 1], [], []>} : vector<32x8xf32>, vector<8x24xf32>, vector<32x24xf32> -> vector<32x24xf32>
    %24 = arith.addf %17, %23 : vector<32x24xf32>
    %c0_17 = arith.constant 0 : index
    %c0_18 = arith.constant 0 : index
    %25 = vector.load %arg4[%c0_17, %c0_18] : memref<32x1xf32, #tpu.memory_space<vmem>>, vector<32x1xf32>
    %26 = vector.broadcast %25 : vector<32x1xf32> to vector<32x24xf32>
    %27 = arith.addf %24, %26 : vector<32x24xf32>
    %28 = vector.broadcast %3 : vector<1x24xf32> to vector<32x24xf32>
    %29 = arith.mulf %27, %28 : vector<32x24xf32>
    %cst_19 = arith.constant 0.000000e+00 : f32
    %30 = vector.broadcast %cst_19 : f32 to vector<32x24xf32>
    %31 = arith.maximumf %29, %30 : vector<32x24xf32>
    %32 = vector.broadcast %3 : vector<1x24xf32> to vector<32x24xf32>
    %33 = arith.mulf %31, %32 : vector<32x24xf32>
    %cst_20 = arith.constant dense<0.000000e+00> : vector<24xf32>
    %34 = vector.multi_reduction <add>, %33, %cst_20 [0] : vector<32x24xf32> to vector<24xf32>
    %35 = vector.shape_cast %34 : vector<24xf32> to vector<1x24xf32>
    %cst_21 = arith.constant 3.200000e+01 : f32
    %36 = vector.broadcast %cst_21 : f32 to vector<1x24xf32>
    %37 = arith.divf %35, %36 : vector<1x24xf32>
    %38 = vector.broadcast %37 : vector<1x24xf32> to vector<32x24xf32>
    %39 = arith.subf %33, %38 : vector<32x24xf32>
    %40 = arith.mulf %39, %39 : vector<32x24xf32>
    %cst_22 = arith.constant dense<0.000000e+00> : vector<24xf32>
    %41 = vector.multi_reduction <add>, %40, %cst_22 [0] : vector<32x24xf32> to vector<24xf32>
    %42 = vector.shape_cast %41 : vector<24xf32> to vector<1x24xf32>
    %cst_23 = arith.constant 3.200000e+01 : f32
    %43 = vector.broadcast %cst_23 : f32 to vector<1x24xf32>
    %44 = arith.divf %42, %43 : vector<1x24xf32>
    %45 = vector.broadcast %37 : vector<1x24xf32> to vector<32x24xf32>
    %46 = arith.subf %33, %45 : vector<32x24xf32>
    %cst_24 = arith.constant 9.99999974E-5 : f32
    %47 = vector.broadcast %cst_24 : f32 to vector<1x24xf32>
    %48 = arith.addf %44, %47 : vector<1x24xf32>
    %49 = math.rsqrt %48 : vector<1x24xf32>
    %50 = vector.broadcast %49 : vector<1x24xf32> to vector<32x24xf32>
    %51 = arith.mulf %46, %50 : vector<32x24xf32>
    %c0_25 = arith.constant 0 : index
    %c0_26 = arith.constant 0 : index
    %52 = vector.load %arg5[%c0_25, %c0_26] : memref<32x1xf32, #tpu.memory_space<vmem>>, vector<32x1xf32>
    %53 = vector.broadcast %52 : vector<32x1xf32> to vector<32x24xf32>
    %54 = arith.mulf %51, %53 : vector<32x24xf32>
    %c0_27 = arith.constant 0 : index
    %c0_28 = arith.constant 0 : index
    %55 = vector.load %arg6[%c0_27, %c0_28] : memref<32x1xf32, #tpu.memory_space<vmem>>, vector<32x1xf32>
    %56 = vector.broadcast %55 : vector<32x1xf32> to vector<32x24xf32>
    %57 = arith.addf %54, %56 : vector<32x24xf32>
    %58 = vector.broadcast %3 : vector<1x24xf32> to vector<32x24xf32>
    %59 = arith.mulf %57, %58 : vector<32x24xf32>
    %c0_29 = arith.constant 0 : index
    %c0_30 = arith.constant 0 : index
    %c0_31 = arith.constant 0 : index
    %60 = vector.load %arg7[%c0_29, %c0_30, %c0_31] : memref<1x32x24xf32, #tpu.memory_space<vmem>>, vector<1x32x24xf32>
    %61 = vector.shape_cast %60 : vector<1x32x24xf32> to vector<32x24xf32>
    %62 = vector.shape_cast %59 : vector<32x24xf32> to vector<1x32x24xf32>
    tpu.vector_store %arg7[%c0_29, %c0_30, %c0_31], %62 {strides = array<i32>} : memref<1x32x24xf32, #tpu.memory_space<vmem>>, vector<1x32x24xf32>,
    return
  }
  func.func @transform_0(%arg0: i32) -> (i32, i32, i32) {
    %c0_i32 = arith.constant 0 : i32
    %c0_i32_0 = arith.constant 0 : i32
    %c0_i32_1 = arith.constant 0 : i32
    return %arg0, %c0_i32, %c0_i32_0 : i32, i32, i32
  }
  func.func @transform_1(%arg0: i32) -> (i32, i32, i32) {
    %c0_i32 = arith.constant 0 : i32
    %c0_i32_0 = arith.constant 0 : i32
    %c0_i32_1 = arith.constant 0 : i32
    return %arg0, %c0_i32, %c0_i32_0 : i32, i32, i32
  }
  func.func @transform_2(%arg0: i32) -> (i32, i32, i32) {
    %c0_i32 = arith.constant 0 : i32
    %c0_i32_0 = arith.constant 0 : i32
    %c0_i32_1 = arith.constant 0 : i32
    %c0_i32_2 = arith.constant 0 : i32
    return %c0_i32, %c0_i32_0, %c0_i32_1 : i32, i32, i32
  }
  func.func @transform_3(%arg0: i32) -> (i32, i32) {
    %c0_i32 = arith.constant 0 : i32
    %c0_i32_0 = arith.constant 0 : i32
    %c0_i32_1 = arith.constant 0 : i32
    return %c0_i32, %c0_i32_0 : i32, i32
  }
  func.func @transform_4(%arg0: i32) -> (i32, i32) {
    %c0_i32 = arith.constant 0 : i32
    %c0_i32_0 = arith.constant 0 : i32
    %c0_i32_1 = arith.constant 0 : i32
    return %c0_i32, %c0_i32_0 : i32, i32
  }
  func.func @transform_5(%arg0: i32) -> (i32, i32) {
    %c0_i32 = arith.constant 0 : i32
    %c0_i32_0 = arith.constant 0 : i32
    %c0_i32_1 = arith.constant 0 : i32
    return %c0_i32, %c0_i32_0 : i32, i32
  }
  func.func @transform_6(%arg0: i32) -> (i32, i32, i32) {
    %c0_i32 = arith.constant 0 : i32
    %c0_i32_0 = arith.constant 0 : i32
    %c0_i32_1 = arith.constant 0 : i32
    return %arg0, %c0_i32, %c0_i32_0 : i32, i32, i32
  }
}

</mosaic_0001>

<llo_original>
// kernel: tpu_custom_call.1
$region0: #{tpu_custom_call.1}
  #allocation0 [shape = 'u32[]', space=smem, size = 0x4, offset = 0x4, fixed_abs, tag = 'smem constant byte address 0x4 - core index']
  #allocation1 [shape = 'u32[144,128]{1,0:T(1,128)}', space=vmem, size = 0x12000, scoped, tag = 'internal scratch']
  %s0 = inlined_call_operand.vmem [shape: f32[2,8,24], index: 0, kind: input, shape index: {}]
  %s1 = inlined_call_operand.vmem [shape: f32[2,1,24], index: 1, kind: input, shape index: {}]
  %s2 = inlined_call_operand.vmem [shape: f32[3,32,8], index: 2, kind: input, shape index: {}]
  %s3 = inlined_call_operand.vmem [shape: f32[32,1], index: 3, kind: input, shape index: {}]
  %s4 = inlined_call_operand.vmem [shape: f32[32,1], index: 4, kind: input, shape index: {}]
  %s5 = inlined_call_operand.vmem [shape: f32[32,1], index: 5, kind: input, shape index: {}]
  %s6 = inlined_call_operand.vmem [shape: f32[2,32,24], index: 6, kind: output, shape index: {}]
  %s7 = sld [smem:[#allocation0]]
  $region57: #{tpu_custom_call.1} parent=0
    _
  %s9 = ssub.s32 1, %s7
  %s10 = scalar_select 0, %s9, %s7
  loop: start=0, step=1, limit=4
  $region2: #{tpu_custom_call.1} parent=0 // loop_pre_header
    _
  $region3: #{tpu_custom_call.1} parent=0 // loop_header
    %s12 = sphi 0, %s16
    %p13 = scmp.ge.s32.totalorder %s12, 4
    %s22 = sphi 0, %s24
    %s25 = sphi 0, %s22
    %s26 = sphi 0, %s25
    %s42 = sphi 0, %s26
    %s48 = sphi 0, %s50
    %s51 = sphi 0, %s48
    %s52 = sphi 0, %s51
    %s68 = sphi 0, %s52
    %s72 = sphi 0, %s72
    %s74 = sphi 0, %s72
    %s75 = sphi 0, %s74
    %s89 = sphi 0, %s75
    %s93 = sphi 0, %s93
    %s95 = sphi 0, %s93
    %s96 = sphi 0, %s95
    %s110 = sphi 0, %s96
    %s114 = sphi 0, %s114
    %s116 = sphi 0, %s114
    %s117 = sphi 0, %s116
    %s131 = sphi 0, %s117
    %s135 = sphi 0, %s135
    %s137 = sphi 0, %s135
    %s138 = sphi 0, %s137
    %s152 = sphi 0, %s138
    %s158 = sphi 0, %s160
    %s161 = sphi 0, %s158
    %s162 = sphi 0, %s161
    %s178 = sphi 0, %s162
  $region4: #{tpu_custom_call.1} parent=0 // loop_header_branch
    %15 = sbr.rel (%p13) target = $region8
  $region5: #{tpu_custom_call.1} parent=0 // loop_body
    %s17 = ssub.s32 %s12, 1
    %s18 = ssub.s32 %s12, 2
    %s19 = sadd.s32 %s12, 1
    %s20 = ssub.s32 %s12, %s19
    %p21 = scmp.eq.s32.totalorder %s20, 0
    %s23 = sadd.s32 %s22, 1
    %s24 = scalar_select %p21, %s22, %s23
    %p27 = pneg %p21
    %p28 = scmp.eq.s32.totalorder %s12, 1
    %p29 = por %p27, %p28
    %p30 = scmp.ne.s32.totalorder %s22, %s25
    %p31 = scmp.eq.s32.totalorder %s12, 0
    %p32 = por %p30, %p31
    %p33 = scmp.ne.s32.totalorder %s22, %s25
    %p34 = scmp.eq.s32.totalorder %s17, 1
    %p35 = por %p33, %p34
    %p36 = scmp.ne.s32.totalorder %s25, %s26
    %p37 = scmp.eq.s32.totalorder %s17, 0
    %p38 = por %p36, %p37
    %p39 = scmp.ne.s32.totalorder %s25, %s26
    %p40 = scmp.eq.s32.totalorder %s18, 1
    %p41 = por %p39, %p40
    %p43 = scmp.ne.s32.totalorder %s26, %s42
    %p44 = scmp.eq.s32.totalorder %s18, 0
    %p45 = por %p43, %p44
    %s46 = ssub.s32 %s12, %s19
    %p47 = scmp.eq.s32.totalorder %s46, 0
    %s49 = sadd.s32 %s48, 1
    %s50 = scalar_select %p47, %s48, %s49
    %p53 = pneg %p47
    %p54 = scmp.eq.s32.totalorder %s12, 1
    %p55 = por %p53, %p54
    %p56 = scmp.ne.s32.totalorder %s48, %s51
    %p57 = scmp.eq.s32.totalorder %s12, 0
    %p58 = por %p56, %p57
    %p59 = scmp.ne.s32.totalorder %s48, %s51
    %p60 = scmp.eq.s32.totalorder %s17, 1
    %p61 = por %p59, %p60
    %p62 = scmp.ne.s32.totalorder %s51, %s52
    %p63 = scmp.eq.s32.totalorder %s17, 0
    %p64 = por %p62, %p63
    %p65 = scmp.ne.s32.totalorder %s51, %s52
    %p66 = scmp.eq.s32.totalorder %s18, 1
    %p67 = por %p65, %p66
    %p69 = scmp.ne.s32.totalorder %s52, %s68
    %p70 = scmp.eq.s32.totalorder %s18, 0
    %p71 = por %p69, %p70
    %s73 = sadd.s32 %s72, 1
    %p76 = scmp.eq.s32.totalorder %s12, 1
    %p77 = scmp.ne.s32.totalorder %s72, %s74
    %p78 = scmp.eq.s32.totalorder %s12, 0
    %p79 = por %p77, %p78
    %p80 = scmp.ne.s32.totalorder %s72, %s74
    %p81 = scmp.eq.s32.totalorder %s17, 1
    %p82 = por %p80, %p81
    %p83 = scmp.ne.s32.totalorder %s74, %s75
    %p84 = scmp.eq.s32.totalorder %s17, 0
    %p85 = por %p83, %p84
    %p86 = scmp.ne.s32.totalorder %s74, %s75
    %p87 = scmp.eq.s32.totalorder %s18, 1
    %p88 = por %p86, %p87
    %p90 = scmp.ne.s32.totalorder %s75, %s89
    %p91 = scmp.eq.s32.totalorder %s18, 0
    %p92 = por %p90, %p91
    %s94 = sadd.s32 %s93, 1
    %p97 = scmp.eq.s32.totalorder %s12, 1
    %p98 = scmp.ne.s32.totalorder %s93, %s95
    %p99 = scmp.eq.s32.totalorder %s12, 0
    %p100 = por %p98, %p99
    %p101 = scmp.ne.s32.totalorder %s93, %s95
    %p102 = scmp.eq.s32.totalorder %s17, 1
    %p103 = por %p101, %p102
    %p104 = scmp.ne.s32.totalorder %s95, %s96
    %p105 = scmp.eq.s32.totalorder %s17, 0
    %p106 = por %p104, %p105
    %p107 = scmp.ne.s32.totalorder %s95, %s96
    %p108 = scmp.eq.s32.totalorder %s18, 1
    %p109 = por %p107, %p108
    %p111 = scmp.ne.s32.totalorder %s96, %s110
    %p112 = scmp.eq.s32.totalorder %s18, 0
    %p113 = por %p111, %p112
    %s115 = sadd.s32 %s114, 1
    %p118 = scmp.eq.s32.totalorder %s12, 1
    %p119 = scmp.ne.s32.totalorder %s114, %s116
    %p120 = scmp.eq.s32.totalorder %s12, 0
    %p121 = por %p119, %p120
    %p122 = scmp.ne.s32.totalorder %s114, %s116
    %p123 = scmp.eq.s32.totalorder %s17, 1
    %p124 = por %p122, %p123
    %p125 = scmp.ne.s32.totalorder %s116, %s117
    %p126 = scmp.eq.s32.totalorder %s17, 0
    %p127 = por %p125, %p126
    %p128 = scmp.ne.s32.totalorder %s116, %s117
    %p129 = scmp.eq.s32.totalorder %s18, 1
    %p130 = por %p128, %p129
    %p132 = scmp.ne.s32.totalorder %s117, %s131
    %p133 = scmp.eq.s32.totalorder %s18, 0
    %p134 = por %p132, %p133
    %s136 = sadd.s32 %s135, 1
    %p139 = scmp.eq.s32.totalorder %s12, 1
    %p140 = scmp.ne.s32.totalorder %s135, %s137
    %p141 = scmp.eq.s32.totalorder %s12, 0
    %p142 = por %p140, %p141
    %p143 = scmp.ne.s32.totalorder %s135, %s137
    %p144 = scmp.eq.s32.totalorder %s17, 1
    %p145 = por %p143, %p144
    %p146 = scmp.ne.s32.totalorder %s137, %s138
    %p147 = scmp.eq.s32.totalorder %s17, 0
    %p148 = por %p146, %p147
    %p149 = scmp.ne.s32.totalorder %s137, %s138
    %p150 = scmp.eq.s32.totalorder %s18, 1
    %p151 = por %p149, %p150
    %p153 = scmp.ne.s32.totalorder %s138, %s152
    %p154 = scmp.eq.s32.totalorder %s18, 0
    %p155 = por %p153, %p154
    %s156 = ssub.s32 %s12, %s19
    %p157 = scmp.eq.s32.totalorder %s156, 0
    %s159 = sadd.s32 %s158, 1
    %s160 = scalar_select %p157, %s158, %s159
    %p163 = pneg %p157
    %p164 = scmp.eq.s32.totalorder %s12, 1
    %p165 = por %p163, %p164
    %p166 = scmp.ne.s32.totalorder %s158, %s161
    %p167 = scmp.eq.s32.totalorder %s12, 0
    %p168 = por %p166, %p167
    %p169 = scmp.ne.s32.totalorder %s158, %s161
    %p170 = scmp.eq.s32.totalorder %s17, 1
    %p171 = por %p169, %p170
    %p172 = scmp.ne.s32.totalorder %s161, %s162
    %p173 = scmp.eq.s32.totalorder %s17, 0
    %p174 = por %p172, %p173
    %p175 = scmp.ne.s32.totalorder %s161, %s162
    %p176 = scmp.eq.s32.totalorder %s18, 1
    %p177 = por %p175, %p176
    %p179 = scmp.ne.s32.totalorder %s162, %s178
    %p180 = scmp.eq.s32.totalorder %s18, 0
    %p181 = por %p179, %p180
    %p182 = scmp.le.s32.totalorder 1, %s12
    %p183 = scmp.lt.s32.totalorder %s12, 3
    %p184 = pnand %p182, %p183
    %p185 = pneg %p184
    // Predicated region
    $region9: #{tpu_custom_call.1} parent=5 // pred_check
      _
    $region10: #{tpu_custom_call.1} parent=5 // pred_check_branch
      %187 = sbr.rel (%p184) target = $region12
    $region11: #{tpu_custom_call.1} parent=5 // pred_region
      %s188 = ssub.s32 %s12, 1
      // Predicated region
      $region13: #{tpu_custom_call.1} parent=11 // pred_check
        %p189 = pneg %p85
      $region14: #{tpu_custom_call.1} parent=11 // pred_check_branch
        %191 = sbr.rel (%p189) target = $region16
      $region15: #{tpu_custom_call.1} parent=11 // pred_region
        _
      $region16: #{tpu_custom_call.1} parent=11 // pred_fallthru
        _
      // Predicated region
      $region17: #{tpu_custom_call.1} parent=11 // pred_check
        %p192 = pneg %p106
      $region18: #{tpu_custom_call.1} parent=11 // pred_check_branch
        %194 = sbr.rel (%p192) target = $region20
      $region19: #{tpu_custom_call.1} parent=11 // pred_region
        _
      $region20: #{tpu_custom_call.1} parent=11 // pred_fallthru
        _
      // Predicated region
      $region21: #{tpu_custom_call.1} parent=11 // pred_check
        %p195 = pneg %p127
      $region22: #{tpu_custom_call.1} parent=11 // pred_check_branch
        %197 = sbr.rel (%p195) target = $region24
      $region23: #{tpu_custom_call.1} parent=11 // pred_region
        _
      $region24: #{tpu_custom_call.1} parent=11 // pred_fallthru
        _
      // Predicated region
      $region25: #{tpu_custom_call.1} parent=11 // pred_check
        %p198 = pneg %p148
      $region26: #{tpu_custom_call.1} parent=11 // pred_check_branch
        %200 = sbr.rel (%p198) target = $region28
      $region27: #{tpu_custom_call.1} parent=11 // pred_region
        _
      $region28: #{tpu_custom_call.1} parent=11 // pred_fallthru
        _
    $region12: #{tpu_custom_call.1} parent=5 // pred_fallthru
      _
    %p201 = scmp.lt.s32.totalorder %s12, 2
    // Predicated region
    $region29: #{tpu_custom_call.1} parent=5 // pred_check
      %p202 = pneg %p201
    $region30: #{tpu_custom_call.1} parent=5 // pred_check_branch
      %204 = sbr.rel (%p202) target = $region32
    $region31: #{tpu_custom_call.1} parent=5 // pred_region
      // Predicated region
      $region33: #{tpu_custom_call.1} parent=31 // pred_check
        %p205 = pneg %p32
      $region34: #{tpu_custom_call.1} parent=31 // pred_check_branch
        %207 = sbr.rel (%p205) target = $region36
      $region35: #{tpu_custom_call.1} parent=31 // pred_region
        %p208 = scmp.lt.s32.totalorder %s12, 1
        %s209 = scalar_select %p208, %s12, 1
        %s210 = smul.addr %s209, 8
        %s211 = scalar_lea.vmem %s0, %s210
      $region36: #{tpu_custom_call.1} parent=31 // pred_fallthru
        _
      // Predicated region
      $region37: #{tpu_custom_call.1} parent=31 // pred_check
        %p212 = pneg %p58
      $region38: #{tpu_custom_call.1} parent=31 // pred_check_branch
        %214 = sbr.rel (%p212) target = $region40
      $region39: #{tpu_custom_call.1} parent=31 // pred_region
        %p215 = scmp.lt.s32.totalorder %s12, 1
        %s216 = scalar_select %p215, %s12, 1
        %s217 = scalar_lea.vmem %s1, %s216
      $region40: #{tpu_custom_call.1} parent=31 // pred_fallthru
        _
    $region32: #{tpu_custom_call.1} parent=5 // pred_fallthru
      _
    %p218 = scmp.le.s32.totalorder 1, %s12
    %p219 = scmp.lt.s32.totalorder %s12, 3
    %p220 = pnand %p218, %p219
    %p221 = pneg %p220
    // Predicated region
    $region41: #{tpu_custom_call.1} parent=5 // pred_check
      _
    $region42: #{tpu_custom_call.1} parent=5 // pred_check_branch
      %223 = sbr.rel (%p220) target = $region44
    $region43: #{tpu_custom_call.1} parent=5 // pred_region
      %s224 = ssub.s32 %s12, 1
      %p225 = scmp.lt.s32.totalorder %s17, 1
      %s226 = scalar_select %p225, %s17, 1
      %s227 = smul.addr %s226, 8
      %s228 = scalar_lea.vmem %s0, %s227
      %p229 = pneg %p38
      %p230 = pneg %p35
      %p231 = scmp.lt.s32.totalorder %s17, 1
      %s232 = scalar_select %p231, %s17, 1
      %s233 = scalar_lea.vmem %s1, %s232
      %p234 = pneg %p64
      %p235 = pneg %p61
      %p236 = pneg %p85
      %p237 = pneg %p82
      %p238 = pneg %p106
      %p239 = pneg %p103
      %p240 = pneg %p127
      %p241 = pneg %p124
      %p242 = pneg %p148
      %p243 = pneg %p145
      %p244 = pneg %p174
      %p245 = pneg %p171
      %p246 = scmp.lt.s32.totalorder %s17, 1
      %s247 = scalar_select %p246, %s17, 1
      %s248 = smul.addr %s247, 4
      %s249 = smul.addr %s248, 8
      %s250 = scalar_lea.vmem %s6, %s249
      %p251 = scmp.lt.s32.totalorder %s17, 1
      %s252 = scalar_select %p251, %s17, 1
      %s253 = smul.addr %s252, 8
      %s254 = scalar_lea.vmem %s0, %s253
      %p255 = scmp.lt.s32.totalorder %s17, 1
      %s256 = scalar_select %p255, %s17, 1
      %s257 = scalar_lea.vmem %s1, %s256
      %p258 = scmp.lt.s32.totalorder %s17, 1
      %s259 = scalar_select %p258, %s17, 1
      %s260 = smul.addr %s259, 4
      %s261 = smul.addr %s260, 8
      %s262 = scalar_lea.vmem %s6, %s261
      %v263 = vld [vmem:[%s254] sm:$0xff]
      %v264 = vld [vmem:[%s257] sm:$0x1]
      %v266 = vlaneseq
      %v267 = vshrl.u32 %v266, 7
      %v268 = vsub.s32 0, %v267
      %v269 = vrot.slane %v264, %v268
      %v271 = vmul.f32 %v263, %v269
      %v272 = vld [vmem:[%s2] sm:$0xff]
      %v273 = vld [vmem:[%s2 + $0x8] sm:$0xff]
      %v274 = vld [vmem:[%s2 + $0x10] sm:$0xff]
      %v275 = vld [vmem:[%s2 + $0x18] sm:$0xff]
      %277 = vrot.lane.b32.xlu0 %v271, 1
      %v278 = vpop.permute.xlu0 %277
      %vm280 = vcmask 7168
      %v281 = vsel %vm280, 0.0, %v278
      %s282 = scalar_lea.vmem %s2, 32
      %v283 = vld [vmem:[%s282] sm:$0xff]
      %v284 = vld [vmem:[%s282 + $0x8] sm:$0xff]
      %v285 = vld [vmem:[%s282 + $0x10] sm:$0xff]
      %v286 = vld [vmem:[%s282 + $0x18] sm:$0xff]
      %vm287 = vcmask 64512
      %v289 = vsel %vm287, %v283, 0
      %v292 = vsel %vm287, %v284, 0
      %v295 = vsel %vm287, %v285, 0
      %v298 = vsel %vm287, %v286, 0
      %300 = vmatprep.subr.mxu0 0.0
      %301 = vmatpush1.msra.mxu0 %v271
      %302 = vmatprep.subr.mxu0 0.0
      %303 = vmatpush1.msra.mxu0 0.0
      %304 = vmatprep.subr.mxu0 0.0
      %305 = vmatpush1.msra.mxu0 0.0
      %306 = vmatprep.subr.mxu0 0.0
      %307 = vmatpush1.msra.mxu0 0.0
      %308 = vmatprep.subr.mxu0 0.0
      %309 = vmatpush1.msra.mxu0 0.0
      %310 = vmatprep.subr.mxu0 0.0
      %311 = vmatpush1.msra.mxu0 0.0
      %312 = vmatprep.subr.mxu0 0.0
      %313 = vmatpush1.msra.mxu0 0.0
      %314 = vmatprep.subr.mxu0 0.0
      %315 = vmatpush1.msra.mxu0 0.0
      %316 = vmatprep.subr.mxu0 0.0
      %317 = vmatpush1.msra.mxu0 0.0
      %318 = vmatprep.subr.mxu0 0.0
      %319 = vmatpush1.msra.mxu0 0.0
      %320 = vmatprep.subr.mxu0 0.0
      %321 = vmatpush1.msra.mxu0 0.0
      %322 = vmatprep.subr.mxu0 0.0
      %323 = vmatpush1.msra.mxu0 0.0
      %324 = vmatprep.subr.mxu0 0.0
      %325 = vmatpush1.msra.mxu0 0.0
      %326 = vmatprep.subr.mxu0 0.0
      %327 = vmatpush1.msra.mxu0 0.0
      %328 = vmatprep.subr.mxu0 0.0
      %329 = vmatpush1.msra.mxu0 0.0
      %330 = vmatprep.subr.mxu0 0.0
      %331 = vmatpush1.msra.mxu0 0.0
      %332 = vmatprep.subr.mxu0 0.0
      %333 = vmatpush1.msra.mxu0 0.0
      %334 = vmatprep.subr.mxu0 0.0
      %335 = vmatpush1.msra.mxu0 0.0
      %336 = vmatprep.subr.mxu0 0.0
      %337 = vmatpush1.msra.mxu0 0.0
      %338 = vmatprep.subr.mxu0 0.0
      %339 = vmatpush1.msra.mxu0 0.0
      %340 = vmatprep.subr.mxu0 0.0
      %341 = vmatpush1.msra.mxu0 0.0
      %342 = vmatprep.subr.mxu0 0.0
      %343 = vmatpush1.msra.mxu0 0.0
      %344 = vmatprep.subr.mxu0 0.0
      %345 = vmatpush1.msra.mxu0 0.0
      %346 = vmatprep.subr.mxu0 0.0
      %347 = vmatpush1.msra.mxu0 0.0
      %348 = vmatprep.subr.mxu0 0.0
      %349 = vmatpush1.msra.mxu0 0.0
      %350 = vmatprep.subr.mxu0 0.0
      %351 = vmatpush1.msra.mxu0 0.0
      %352 = vmatprep.subr.mxu0 0.0
      %353 = vmatpush1.msra.mxu0 0.0
      %354 = vmatprep.subr.mxu0 0.0
      %355 = vmatpush1.msra.mxu0 0.0
      %356 = vmatprep.subr.mxu0 0.0
      %357 = vmatpush1.msra.mxu0 0.0
      %358 = vmatprep.subr.mxu0 0.0
      %359 = vmatpush1.msra.mxu0 0.0
      %360 = vmatprep.subr.mxu0 0.0
      %361 = vmatpush1.msra.mxu0 0.0
      %362 = vmatprep.subr.mxu0 0.0
      %363 = vmatpush1.msra.mxu0 0.0
      %364 = vmatprep.mubr.f32.mxu0 0.0
      %365 = vmatmul.mubr.f32.gmra.mrb[0].mxu0 %v289
      %v366 = vpop.f32.mrb[0].mxu0
      %v367 = vadd.f32 0.0, %v366
      %v368 = vpop.f32.mrb[0].mxu0
      %369 = vmatprep.mubr.f32.mxu0 0.0
      %370 = vmatmul.mubr.f32.gmra.mrb[0].mxu0 %v292
      %v371 = vpop.f32.mrb[0].mxu0
      %v372 = vadd.f32 0.0, %v371
      %v373 = vpop.f32.mrb[0].mxu0
      %374 = vmatprep.mubr.f32.mxu0 0.0
      %375 = vmatmul.mubr.f32.gmra.mrb[0].mxu0 %v295
      %v376 = vpop.f32.mrb[0].mxu0
      %v377 = vadd.f32 0.0, %v376
      %v378 = vpop.f32.mrb[0].mxu0
      %379 = vmatprep.mubr.f32.mxu0 0.0
      %380 = vmatmul.mubr.f32.gmra.mrb[0].mxu0 %v298
      %v381 = vpop.f32.mrb[0].mxu0
      %v382 = vadd.f32 0.0, %v381
      %v383 = vpop.f32.mrb[0].mxu0
      %384 = vdwg.mxu0
      %v386 = vsel %vm287, %v272, 0
      %v389 = vsel %vm287, %v273, 0
      %v392 = vsel %vm287, %v274, 0
      %v395 = vsel %vm287, %v275, 0
      %397 = vmatprep.subr.mxu0 0.0
      %398 = vmatpush1.msra.mxu0 %v281
      %399 = vmatprep.subr.mxu0 0.0
      %400 = vmatpush1.msra.mxu0 0.0
      %401 = vmatprep.subr.mxu0 0.0
      %402 = vmatpush1.msra.mxu0 0.0
      %403 = vmatprep.subr.mxu0 0.0
      %404 = vmatpush1.msra.mxu0 0.0
      %405 = vmatprep.subr.mxu0 0.0
      %406 = vmatpush1.msra.mxu0 0.0
      %407 = vmatprep.subr.mxu0 0.0
      %408 = vmatpush1.msra.mxu0 0.0
      %409 = vmatprep.subr.mxu0 0.0
      %410 = vmatpush1.msra.mxu0 0.0
      %411 = vmatprep.subr.mxu0 0.0
      %412 = vmatpush1.msra.mxu0 0.0
      %413 = vmatprep.subr.mxu0 0.0
      %414 = vmatpush1.msra.mxu0 0.0
      %415 = vmatprep.subr.mxu0 0.0
      %416 = vmatpush1.msra.mxu0 0.0
      %417 = vmatprep.subr.mxu0 0.0
      %418 = vmatpush1.msra.mxu0 0.0
      %419 = vmatprep.subr.mxu0 0.0
      %420 = vmatpush1.msra.mxu0 0.0
      %421 = vmatprep.subr.mxu0 0.0
      %422 = vmatpush1.msra.mxu0 0.0
      %423 = vmatprep.subr.mxu0 0.0
      %424 = vmatpush1.msra.mxu0 0.0
      %425 = vmatprep.subr.mxu0 0.0
      %426 = vmatpush1.msra.mxu0 0.0
      %427 = vmatprep.subr.mxu0 0.0
      %428 = vmatpush1.msra.mxu0 0.0
      %429 = vmatprep.subr.mxu0 0.0
      %430 = vmatpush1.msra.mxu0 0.0
      %431 = vmatprep.subr.mxu0 0.0
      %432 = vmatpush1.msra.mxu0 0.0
      %433 = vmatprep.subr.mxu0 0.0
      %434 = vmatpush1.msra.mxu0 0.0
      %435 = vmatprep.subr.mxu0 0.0
      %436 = vmatpush1.msra.mxu0 0.0
      %437 = vmatprep.subr.mxu0 0.0
      %438 = vmatpush1.msra.mxu0 0.0
      %439 = vmatprep.subr.mxu0 0.0
      %440 = vmatpush1.msra.mxu0 0.0
      %441 = vmatprep.subr.mxu0 0.0
      %442 = vmatpush1.msra.mxu0 0.0
      %443 = vmatprep.subr.mxu0 0.0
      %444 = vmatpush1.msra.mxu0 0.0
      %445 = vmatprep.subr.mxu0 0.0
      %446 = vmatpush1.msra.mxu0 0.0
      %447 = vmatprep.subr.mxu0 0.0
      %448 = vmatpush1.msra.mxu0 0.0
      %449 = vmatprep.subr.mxu0 0.0
      %450 = vmatpush1.msra.mxu0 0.0
      %451 = vmatprep.subr.mxu0 0.0
      %452 = vmatpush1.msra.mxu0 0.0
      %453 = vmatprep.subr.mxu0 0.0
      %454 = vmatpush1.msra.mxu0 0.0
      %455 = vmatprep.subr.mxu0 0.0
      %456 = vmatpush1.msra.mxu0 0.0
      %457 = vmatprep.subr.mxu0 0.0
      %458 = vmatpush1.msra.mxu0 0.0
      %459 = vmatprep.subr.mxu0 0.0
      %460 = vmatpush1.msra.mxu0 0.0
      %461 = vmatprep.mubr.f32.mxu0 0.0
      %462 = vmatmul.mubr.f32.gmra.mrb[0].mxu0 %v386
      %v463 = vpop.f32.mrb[0].mxu0
      %v464 = vadd.f32 %v367, %v463
      %v465 = vpop.f32.mrb[0].mxu0
      %466 = vmatprep.mubr.f32.mxu0 0.0
      %467 = vmatmul.mubr.f32.gmra.mrb[0].mxu0 %v389
      %v468 = vpop.f32.mrb[0].mxu0
      %v469 = vadd.f32 %v372, %v468
      %v470 = vpop.f32.mrb[0].mxu0
      %471 = vmatprep.mubr.f32.mxu0 0.0
      %472 = vmatmul.mubr.f32.gmra.mrb[0].mxu0 %v392
      %v473 = vpop.f32.mrb[0].mxu0
      %v474 = vadd.f32 %v377, %v473
      %v475 = vpop.f32.mrb[0].mxu0
      %476 = vmatprep.mubr.f32.mxu0 0.0
      %477 = vmatmul.mubr.f32.gmra.mrb[0].mxu0 %v395
      %v478 = vpop.f32.mrb[0].mxu0
      %v479 = vadd.f32 %v382, %v478
      %v480 = vpop.f32.mrb[0].mxu0
      %481 = vdwg.mxu0
      %s482 = scalar_lea.vmem %s2, 64
      %v483 = vld [vmem:[%s482] sm:$0xff]
      %v484 = vld [vmem:[%s482 + $0x8] sm:$0xff]
      %v485 = vld [vmem:[%s482 + $0x10] sm:$0xff]
      %v486 = vld [vmem:[%s482 + $0x18] sm:$0xff]
      %487 = vrot.lane.b32.xlu0 %v271, 127
      %v488 = vpop.permute.xlu0 %487
      %vm490 = vcmask 187392
      %v491 = vsel %vm490, %v488, 0.0
      %v493 = vsel %vm287, %v483, 0
      %v496 = vsel %vm287, %v484, 0
      %v499 = vsel %vm287, %v485, 0
      %v502 = vsel %vm287, %v486, 0
      %504 = vmatprep.subr.mxu0 0.0
      %505 = vmatpush1.msra.mxu0 %v491
      %506 = vmatprep.subr.mxu0 0.0
      %507 = vmatpush1.msra.mxu0 0.0
      %508 = vmatprep.subr.mxu0 0.0
      %509 = vmatpush1.msra.mxu0 0.0
      %510 = vmatprep.subr.mxu0 0.0
      %511 = vmatpush1.msra.mxu0 0.0
      %512 = vmatprep.subr.mxu0 0.0
      %513 = vmatpush1.msra.mxu0 0.0
      %514 = vmatprep.subr.mxu0 0.0
      %515 = vmatpush1.msra.mxu0 0.0
      %516 = vmatprep.subr.mxu0 0.0
      %517 = vmatpush1.msra.mxu0 0.0
      %518 = vmatprep.subr.mxu0 0.0
      %519 = vmatpush1.msra.mxu0 0.0
      %520 = vmatprep.subr.mxu0 0.0
      %521 = vmatpush1.msra.mxu0 0.0
      %522 = vmatprep.subr.mxu0 0.0
      %523 = vmatpush1.msra.mxu0 0.0
      %524 = vmatprep.subr.mxu0 0.0
      %525 = vmatpush1.msra.mxu0 0.0
      %526 = vmatprep.subr.mxu0 0.0
      %527 = vmatpush1.msra.mxu0 0.0
      %528 = vmatprep.subr.mxu0 0.0
      %529 = vmatpush1.msra.mxu0 0.0
      %530 = vmatprep.subr.mxu0 0.0
      %531 = vmatpush1.msra.mxu0 0.0
      %532 = vmatprep.subr.mxu0 0.0
      %533 = vmatpush1.msra.mxu0 0.0
      %534 = vmatprep.subr.mxu0 0.0
      %535 = vmatpush1.msra.mxu0 0.0
      %536 = vmatprep.subr.mxu0 0.0
      %537 = vmatpush1.msra.mxu0 0.0
      %538 = vmatprep.subr.mxu0 0.0
      %539 = vmatpush1.msra.mxu0 0.0
      %540 = vmatprep.subr.mxu0 0.0
      %541 = vmatpush1.msra.mxu0 0.0
      %542 = vmatprep.subr.mxu0 0.0
      %543 = vmatpush1.msra.mxu0 0.0
      %544 = vmatprep.subr.mxu0 0.0
      %545 = vmatpush1.msra.mxu0 0.0
      %546 = vmatprep.subr.mxu0 0.0
      %547 = vmatpush1.msra.mxu0 0.0
      %548 = vmatprep.subr.mxu0 0.0
      %549 = vmatpush1.msra.mxu0 0.0
      %550 = vmatprep.subr.mxu0 0.0
      %551 = vmatpush1.msra.mxu0 0.0
      %552 = vmatprep.subr.mxu0 0.0
      %553 = vmatpush1.msra.mxu0 0.0
      %554 = vmatprep.subr.mxu0 0.0
      %555 = vmatpush1.msra.mxu0 0.0
      %556 = vmatprep.subr.mxu0 0.0
      %557 = vmatpush1.msra.mxu0 0.0
      %558 = vmatprep.subr.mxu0 0.0
      %559 = vmatpush1.msra.mxu0 0.0
      %560 = vmatprep.subr.mxu0 0.0
      %561 = vmatpush1.msra.mxu0 0.0
      %562 = vmatprep.subr.mxu0 0.0
      %563 = vmatpush1.msra.mxu0 0.0
      %564 = vmatprep.subr.mxu0 0.0
      %565 = vmatpush1.msra.mxu0 0.0
      %566 = vmatprep.subr.mxu0 0.0
      %567 = vmatpush1.msra.mxu0 0.0
      %568 = vmatprep.mubr.f32.mxu0 0.0
      %569 = vmatmul.mubr.f32.gmra.mrb[0].mxu0 %v493
      %v570 = vpop.f32.mrb[0].mxu0
      %v571 = vadd.f32 0.0, %v570
      %v572 = vpop.f32.mrb[0].mxu0
      %573 = vmatprep.mubr.f32.mxu0 0.0
      %574 = vmatmul.mubr.f32.gmra.mrb[0].mxu0 %v496
      %v575 = vpop.f32.mrb[0].mxu0
      %v576 = vadd.f32 0.0, %v575
      %v577 = vpop.f32.mrb[0].mxu0
      %578 = vmatprep.mubr.f32.mxu0 0.0
      %579 = vmatmul.mubr.f32.gmra.mrb[0].mxu0 %v499
      %v580 = vpop.f32.mrb[0].mxu0
      %v581 = vadd.f32 0.0, %v580
      %v582 = vpop.f32.mrb[0].mxu0
      %583 = vmatprep.mubr.f32.mxu0 0.0
      %584 = vmatmul.mubr.f32.gmra.mrb[0].mxu0 %v502
      %v585 = vpop.f32.mrb[0].mxu0
      %v586 = vadd.f32 0.0, %v585
      %v587 = vpop.f32.mrb[0].mxu0
      %588 = vdwg.mxu0
      %v589 = vadd.f32 %v464, %v571
      %v590 = vadd.f32 %v469, %v576
      %v591 = vadd.f32 %v474, %v581
      %v592 = vadd.f32 %v479, %v586
      %v593 = vld [vmem:[%s3] sm:$0xff]
      %v594 = vld [vmem:[%s3 + $0x8] sm:$0xff]
      %v595 = vld [vmem:[%s3 + $0x10] sm:$0xff]
      %v596 = vld [vmem:[%s3 + $0x18] sm:$0xff]
      %598 = vset.pattern.permute.xlu0 0
      %599 = vperm.xlu0 %598, %v593
      %v600 = vpop.permute.xlu0 %599
      %603 = vset.pattern.permute.xlu0 0
      %604 = vperm.xlu0 %603, %v594
      %v605 = vpop.permute.xlu0 %604
      %608 = vset.pattern.permute.xlu0 0
      %609 = vperm.xlu0 %608, %v595
      %v610 = vpop.permute.xlu0 %609
      %613 = vset.pattern.permute.xlu0 0
      %614 = vperm.xlu0 %613, %v596
      %v615 = vpop.permute.xlu0 %614
      %v617 = vadd.f32 %v589, %v600
      %v618 = vadd.f32 %v590, %v605
      %v619 = vadd.f32 %v591, %v610
      %v620 = vadd.f32 %v592, %v615
      %v621 = vmul.f32 %v617, %v269
      %v622 = vmul.f32 %v618, %v269
      %v623 = vmul.f32 %v619, %v269
      %v624 = vmul.f32 %v620, %v269
      %v625 = vmax.f32 %v621, 0.0
      %v626 = vmax.f32 %v622, 0.0
      %v627 = vmax.f32 %v623, 0.0
      %v628 = vmax.f32 %v624, 0.0
      %v629 = vmul.f32 %v625, %v269
      %v630 = vmul.f32 %v626, %v269
      %v631 = vmul.f32 %v627, %v269
      %v632 = vmul.f32 %v628, %v269
      %vm633 = vcmask 195584
      %v634 = vsel %vm633, %v629, 0.0
      %v635 = vsel %vm633, %v630, 0.0
      %v636 = vadd.f32 %v634, %v635
      %v637 = vsel %vm633, %v631, 0.0
      %v638 = vadd.f32 %v636, %v637
      %v639 = vsel %vm633, %v632, 0.0
      %v640 = vadd.f32 %v638, %v639
      %v641 = vrot.slane %v640, 4
      %v642 = vadd.f32 %v640, %v641
      %v643 = vrot.slane %v642, 2
      %v644 = vadd.f32 %v642, %v643
      %v645 = vrot.slane %v644, 1
      %v646 = vadd.f32 %v644, %v645
      %v647 = vrcp.pop 32.0
      %v648 = vmul.f32 %v646, %v647
      %v649 = vsub.f32 %v629, %v648
      %v650 = vsub.f32 %v630, %v648
      %v651 = vsub.f32 %v631, %v648
      %v652 = vsub.f32 %v632, %v648
      %v653 = vmul.f32 %v649, %v649
      %v654 = vmul.f32 %v650, %v650
      %v655 = vmul.f32 %v651, %v651
      %v656 = vmul.f32 %v652, %v652
      %v657 = vsel %vm633, %v653, 0.0
      %v658 = vsel %vm633, %v654, 0.0
      %v659 = vadd.f32 %v657, %v658
      %v660 = vsel %vm633, %v655, 0.0
      %v661 = vadd.f32 %v659, %v660
      %v662 = vsel %vm633, %v656, 0.0
      %v663 = vadd.f32 %v661, %v662
      %v664 = vrot.slane %v663, 4
      %v665 = vadd.f32 %v663, %v664
      %v666 = vrot.slane %v665, 2
      %v667 = vadd.f32 %v665, %v666
      %v668 = vrot.slane %v667, 1
      %v669 = vadd.f32 %v667, %v668
      %v670 = vmul.f32 %v669, %v647
      %v671 = vadd.f32 %v670, 0.0001
      %v672 = vrsqrt.pop %v671
      %v673 = vmul.f32 %v649, %v672
      %v674 = vmul.f32 %v650, %v672
      %v675 = vmul.f32 %v651, %v672
      %v676 = vmul.f32 %v652, %v672
      %v677 = vld [vmem:[%s4] sm:$0xff]
      %v678 = vld [vmem:[%s4 + $0x8] sm:$0xff]
      %v679 = vld [vmem:[%s4 + $0x10] sm:$0xff]
      %v680 = vld [vmem:[%s4 + $0x18] sm:$0xff]
      %682 = vset.pattern.permute.xlu0 0
      %683 = vperm.xlu0 %682, %v677
      %v684 = vpop.permute.xlu0 %683
      %687 = vset.pattern.permute.xlu0 0
      %688 = vperm.xlu0 %687, %v678
      %v689 = vpop.permute.xlu0 %688
      %692 = vset.pattern.permute.xlu0 0
      %693 = vperm.xlu0 %692, %v679
      %v694 = vpop.permute.xlu0 %693
      %697 = vset.pattern.permute.xlu0 0
      %698 = vperm.xlu0 %697, %v680
      %v699 = vpop.permute.xlu0 %698
      %v701 = vmul.f32 %v673, %v684
      %v702 = vmul.f32 %v674, %v689
      %v703 = vmul.f32 %v675, %v694
      %v704 = vmul.f32 %v676, %v699
      %v705 = vld [vmem:[%s5] sm:$0xff]
      %v706 = vld [vmem:[%s5 + $0x8] sm:$0xff]
      %v707 = vld [vmem:[%s5 + $0x10] sm:$0xff]
      %v708 = vld [vmem:[%s5 + $0x18] sm:$0xff]
      %710 = vset.pattern.permute.xlu0 0
      %711 = vperm.xlu0 %710, %v705
      %v712 = vpop.permute.xlu0 %711
      %715 = vset.pattern.permute.xlu0 0
      %716 = vperm.xlu0 %715, %v706
      %v717 = vpop.permute.xlu0 %716
      %720 = vset.pattern.permute.xlu0 0
      %721 = vperm.xlu0 %720, %v707
      %v722 = vpop.permute.xlu0 %721
      %725 = vset.pattern.permute.xlu0 0
      %726 = vperm.xlu0 %725, %v708
      %v727 = vpop.permute.xlu0 %726
      %v729 = vadd.f32 %v701, %v712
      %v730 = vadd.f32 %v702, %v717
      %v731 = vadd.f32 %v703, %v722
      %v732 = vadd.f32 %v704, %v727
      %v733 = vmul.f32 %v729, %v269
      %v734 = vmul.f32 %v730, %v269
      %v735 = vmul.f32 %v731, %v269
      %v736 = vmul.f32 %v732, %v269
      %737 = vst.msk [vmem:[%s262] sm:$0xff] %vm633, %v733
      %738 = vst.msk [vmem:[%s262 + $0x8] sm:$0xff] %vm633, %v734
      %739 = vst.msk [vmem:[%s262 + $0x10] sm:$0xff] %vm633, %v735
      %740 = vst.msk [vmem:[%s262 + $0x18] sm:$0xff] %vm633, %v736
      %p741 = scmp.lt.s32.totalorder %s17, 1
      %s742 = scalar_select %p741, %s17, 1
      %s743 = smul.addr %s742, 4
      %s744 = smul.addr %s743, 8
      %s745 = scalar_lea.vmem %s6, %s744
      // Predicated region
      $region45: #{tpu_custom_call.1} parent=43 // pred_check
        %p746 = pneg %p171
      $region46: #{tpu_custom_call.1} parent=43 // pred_check_branch
        %748 = sbr.rel (%p746) target = $region48
      $region47: #{tpu_custom_call.1} parent=43 // pred_region
        _
      $region48: #{tpu_custom_call.1} parent=43 // pred_fallthru
        _
    $region44: #{tpu_custom_call.1} parent=5 // pred_fallthru
      _
    %p749 = scmp.le.s32.totalorder 2, %s12
    // Predicated region
    $region49: #{tpu_custom_call.1} parent=5 // pred_check
      %p750 = pneg %p749
    $region50: #{tpu_custom_call.1} parent=5 // pred_check_branch
      %752 = sbr.rel (%p750) target = $region52
    $region51: #{tpu_custom_call.1} parent=5 // pred_region
      %s753 = ssub.s32 %s12, 2
      // Predicated region
      $region53: #{tpu_custom_call.1} parent=51 // pred_check
        %p754 = pneg %p177
      $region54: #{tpu_custom_call.1} parent=51 // pred_check_branch
        %756 = sbr.rel (%p754) target = $region56
      $region55: #{tpu_custom_call.1} parent=51 // pred_region
        %p757 = scmp.lt.s32.totalorder %s18, 1
        %s758 = scalar_select %p757, %s18, 1
        %s759 = smul.addr %s758, 4
        %s760 = smul.addr %s759, 8
        %s761 = scalar_lea.vmem %s6, %s760
      $region56: #{tpu_custom_call.1} parent=51 // pred_fallthru
        _
    $region52: #{tpu_custom_call.1} parent=5 // pred_fallthru
      _
  $region6: #{tpu_custom_call.1} parent=0 // loop_footer
    %s16 = sadd.s32 1, %s12
  $region7: #{tpu_custom_call.1} parent=0 // loop_footer_branch
    %11 = sbr.rel target = $region3
  $region8: #{tpu_custom_call.1} parent=0 // loop_exit
    _

</llo_original>
